<compile_context>
chip_gen: v7x
topology: tpu7x:2x2x1
jax: 0.10.0
libtpu: 0.0.40
codegen_flags: <defaults>
</compile_context>

<pallas_src>
import functools

import jax
import jax.numpy as jnp
from jax.experimental import pallas as pl
from jax.experimental.pallas import tpu as pltpu


_VMEM_LIMIT_BYTES = 32 * 1024 * 1024    # safe on v5e/v6e (128 MiB) and v7x (64 MiB)
_BLOCK_BUDGET_BYTES = 8 * 1024 * 1024   # budget for double-buffered x + y blocks


def _choose_channel_tile(C, L, in_itemsize, out_itemsize):
    """Channel tile TC: keep 2 pipeline buffers of (TC, L) for x and y in budget."""
    per_cl = 2 * (in_itemsize + out_itemsize)          # double-buffered input + output
    max_tc = max(1, (_BLOCK_BUDGET_BYTES // per_cl) // max(L, 1))
    if C <= max_tc:
        return C                                        # whole-C block (full dim is always legal)
    tc = max(16, (max_tc // 16) * 16)                   # sublane aligned for f32 and bf16
    return min(tc, C)


# ----------------------------- kernels -------------------------------------


def _revin_norm_kernel(x_ref, gamma_ref, beta_ref, y_ref, mean_ref, std_ref,
                       *, affine: bool):
    # x_ref block: (TC, L) for one (batch, channel-tile).
    x = x_ref[...].astype(jnp.float32)
    L = x.shape[-1]

    # Two-pass stats (exactly torch.std unbiased + eps-after-sqrt semantics).
    # TODO(synk): L == 1 divides by zero (inherited from torch.std(unbiased)).
    mean = jnp.mean(x, axis=-1, keepdims=True)                  # (TC, 1)
    diff = x - mean
    var = jnp.sum(diff * diff, axis=-1, keepdims=True) / (L - 1)
    std = jnp.sqrt(var) + 1e-5                                  # (TC, 1)

    # Fold normalize + affine into one per-element mul/add:
    #   y = diff * (gamma / std) + beta   -- only TC reciprocals, no (TC,L) divide.
    inv_std = pl.reciprocal(std)                                # (TC, 1)
    if affine:
        scale = gamma_ref[...] * inv_std                        # (TC, 1)
        y = diff * scale + beta_ref[...]
    else:
        y = diff * inv_std

    y_ref[...] = y.astype(y_ref.dtype)
    mean_ref[...] = mean
    std_ref[...] = std


def _revin_denorm_kernel(x_ref, gamma_ref, beta_ref, mean_ref, std_ref, y_ref,
                         *, affine: bool):
    # y = ((x - beta) / (gamma + eps)) * std + mean  folded into x*scale + shift
    x = x_ref[...].astype(jnp.float32)
    mean = mean_ref[...]                                        # (TC, 1) f32
    std = std_ref[...]                                          # (TC, 1) f32
    if affine:
        inv_g = pl.reciprocal(gamma_ref[...] + 1e-5)            # (TC, 1)
        scale = std * inv_g
        shift = mean - beta_ref[...] * scale
    else:
        scale = std
        shift = mean
    y_ref[...] = (x * scale + shift).astype(y_ref.dtype)


# ----------------------------- wrappers -------------------------------------


def revin_normalize(x, gamma=None, beta=None, *, affine=True):
    """x: (B, C, L).  Returns (y, mean, std) with mean/std of shape (B, C, 1)."""
    B, C, L = x.shape
    if gamma is None:
        gamma = jnp.ones((C,), jnp.float32)
    if beta is None:
        beta = jnp.zeros((C,), jnp.float32)
    gamma2d = gamma.reshape(C, 1).astype(jnp.float32)
    beta2d = beta.reshape(C, 1).astype(jnp.float32)

    out_dtype = x.dtype
    in_isz = jnp.dtype(x.dtype).itemsize
    out_isz = jnp.dtype(out_dtype).itemsize
    tc = _choose_channel_tile(C, L, in_isz, out_isz)
    grid = (B, pl.cdiv(C, tc))

    kernel = functools.partial(_revin_norm_kernel, affine=affine)

    cost = pl.CostEstimate(
        flops=6 * B * C * L,
        transcendentals=2 * B * C,
        bytes_accessed=B * C * L * (in_isz + out_isz) + 2 * B * C * 4 + 2 * C * 4,
    )

    y, mean, std = pl.pallas_call(
        kernel,
        out_shape=(
            jax.ShapeDtypeStruct((B, C, L), out_dtype),
            jax.ShapeDtypeStruct((B, C, 1), jnp.float32),
            jax.ShapeDtypeStruct((B, C, 1), jnp.float32),
        ),
        grid_spec=pltpu.PrefetchScalarGridSpec(
            num_scalar_prefetch=0,
            grid=grid,
            in_specs=[
                pl.BlockSpec((None, tc, L), lambda b, c: (b, c, 0)),
                pl.BlockSpec((tc, 1), lambda b, c: (c, 0)),
                pl.BlockSpec((tc, 1), lambda b, c: (c, 0)),
            ],
            out_specs=[
                pl.BlockSpec((None, tc, L), lambda b, c: (b, c, 0)),
                pl.BlockSpec((None, tc, 1), lambda b, c: (b, c, 0)),
                pl.BlockSpec((None, tc, 1), lambda b, c: (b, c, 0)),
            ],
        ),
        compiler_params=pltpu.CompilerParams(
            dimension_semantics=("parallel", "parallel"),
            vmem_limit_bytes=_VMEM_LIMIT_BYTES,
        ),
        cost_estimate=cost,
    )(x, gamma2d, beta2d)
    return y, mean, std


def revin_denormalize(x, gamma, beta, mean, std, *, affine=True):
    """x: (B, C, L), mean/std: (B, C, 1).  Returns y: (B, C, L)."""
    B, C, L = x.shape
    if gamma is None:
        gamma = jnp.ones((C,), jnp.float32)
    if beta is None:
        beta = jnp.zeros((C,), jnp.float32)
    gamma2d = gamma.reshape(C, 1).astype(jnp.float32)
    beta2d = beta.reshape(C, 1).astype(jnp.float32)
    mean = mean.astype(jnp.float32)
    std = std.astype(jnp.float32)

    out_dtype = x.dtype
    in_isz = jnp.dtype(x.dtype).itemsize
    out_isz = jnp.dtype(out_dtype).itemsize
    tc = _choose_channel_tile(C, L, in_isz, out_isz)
    grid = (B, pl.cdiv(C, tc))

    kernel = functools.partial(_revin_denorm_kernel, affine=affine)

    cost = pl.CostEstimate(
        flops=2 * B * C * L,
        transcendentals=B * C,
        bytes_accessed=B * C * L * (in_isz + out_isz) + 2 * B * C * 4 + 2 * C * 4,
    )

    y = pl.pallas_call(
        kernel,
        out_shape=jax.ShapeDtypeStruct((B, C, L), out_dtype),
        grid_spec=pltpu.PrefetchScalarGridSpec(
            num_scalar_prefetch=0,
            grid=grid,
            in_specs=[
                pl.BlockSpec((None, tc, L), lambda b, c: (b, c, 0)),
                pl.BlockSpec((tc, 1), lambda b, c: (c, 0)),
                pl.BlockSpec((tc, 1), lambda b, c: (c, 0)),
                pl.BlockSpec((None, tc, 1), lambda b, c: (b, c, 0)),
                pl.BlockSpec((None, tc, 1), lambda b, c: (b, c, 0)),
            ],
            out_specs=pl.BlockSpec((None, tc, L), lambda b, c: (b, c, 0)),
        ),
        compiler_params=pltpu.CompilerParams(
            dimension_semantics=("parallel", "parallel"),
            vmem_limit_bytes=_VMEM_LIMIT_BYTES,
        ),
        cost_estimate=cost,
    )(x, gamma2d, beta2d, mean, std)
    return y


# ----------------------------- reference ------------------------------------


def revin_normalize_ref(x, gamma, beta, affine=True):
    # Replicate PyTorch semantics: permute -> stats over time -> affine -> permute.
    xp = jnp.transpose(x, (0, 2, 1))                      # (B, L, C)
    mean = jnp.mean(xp, axis=1, keepdims=True)            # (B, 1, C)
    std = jnp.std(xp, axis=1, keepdims=True, ddof=1) + 1e-5
    xn = (xp - mean) / std
    if affine:
        xn = xn * gamma + beta                            # gamma/beta (1, 1, C)
    return jnp.transpose(xn, (0, 2, 1)), mean, std


def revin_denormalize_ref(x, gamma, beta, mean, std, affine=True):
    xp = jnp.transpose(x, (0, 2, 1))
    if affine:
        xp = (xp - beta) / (gamma + 1e-5)
    xp = xp * std + mean
    return jnp.transpose(xp, (0, 2, 1))


# ----------------------------- main -----------------------------------------


if __name__ == "__main__":
    B, C, L = 2, 4, 16     # batch, in_channels, sequence length
    key = jax.random.PRNGKey(0)
    x = jax.random.normal(key, (B, C, L), dtype=jnp.float32) * 3.0 + 1.5

    # deterministic parameter init (matches nn.Parameter(torch.ones/zeros))
    gamma = jnp.ones((1, 1, C), dtype=jnp.float32)
    beta = jnp.zeros((1, 1, C), dtype=jnp.float32)

    # --- normalize (denorm=False path) ---
    y, mean_k, std_k = revin_normalize(x, gamma, beta, affine=True)
    y = jax.block_until_ready(y)

    y_ref, mean_ref, std_ref = revin_normalize_ref(x, gamma, beta, affine=True)

    assert jnp.allclose(y, y_ref, atol=1e-5, rtol=1e-5), "normalize mismatch"
    assert jnp.allclose(
        jnp.transpose(mean_k, (0, 2, 1)), mean_ref, atol=1e-5, rtol=1e-5)
    assert jnp.allclose(
        jnp.transpose(std_k, (0, 2, 1)), std_ref, atol=1e-5, rtol=1e-5)

    # --- denormalize (denorm=True path, using saved mean/std) ---
    x_rec = revin_denormalize(y, gamma, beta, mean_k, std_k, affine=True)
    x_rec = jax.block_until_ready(x_rec)

    x_rec_ref = revin_denormalize_ref(
        y_ref, gamma, beta, mean_ref, std_ref, affine=True)

    assert jnp.allclose(x_rec, x_rec_ref, atol=1e-5, rtol=1e-5), "denorm mismatch"
    assert jnp.allclose(x_rec, x, atol=1e-4, rtol=1e-4), "round-trip mismatch"

    # --- affine=False path also exercised once ---
    y0, m0, s0 = revin_normalize(x, None, None, affine=False)
    y0 = jax.block_until_ready(y0)
    y0_ref, _, _ = revin_normalize_ref(x, gamma, beta, affine=False)
    assert jnp.allclose(y0, y0_ref, atol=1e-5, rtol=1e-5), "non-affine mismatch"

    print("KERNEL_OK")
</pallas_src>

<mosaic_0001>
module attributes {stable_mosaic.version = 11 : i64} {
  func.func @_revin_norm_kernel(%arg0: i32, %arg1: i32, %arg2: memref<1x4x16xf32, #tpu.memory_space<vmem>>, %arg3: memref<4x1xf32, #tpu.memory_space<vmem>>, %arg4: memref<4x1xf32, #tpu.memory_space<vmem>>, %arg5: memref<1x4x16xf32, #tpu.memory_space<vmem>>, %arg6: memref<1x4x1xf32, #tpu.memory_space<vmem>>, %arg7: memref<1x4x1xf32, #tpu.memory_space<vmem>>) attributes {dimension_semantics = [#tpu.dimension_semantics<parallel>, #tpu.dimension_semantics<parallel>], iteration_bounds = array<i64: 2, 1>, scalar_prefetch = 0 : i64, scratch_operands = 0 : i64, tpu.core_type = #tpu.core_type<tc>, window_params = [{transform_indices = @transform_0, window_bounds = array<i64: 1, 4, 16>}, {transform_indices = @transform_1, window_bounds = array<i64: 4, 1>}, {transform_indices = @transform_2, window_bounds = array<i64: 4, 1>}, {transform_indices = @transform_3, window_bounds = array<i64: 1, 4, 16>}, {transform_indices = @transform_4, window_bounds = array<i64: 1, 4, 1>}, {transform_indices = @transform_5, window_bounds = array<i64: 1, 4, 1>}]} {
    %c0 = arith.constant 0 : index
    %c0_0 = arith.constant 0 : index
    %c0_1 = arith.constant 0 : index
    %0 = vector.load %arg2[%c0, %c0_0, %c0_1] : memref<1x4x16xf32, #tpu.memory_space<vmem>>, vector<1x4x16xf32>
    %1 = vector.shape_cast %0 : vector<1x4x16xf32> to vector<4x16xf32>
    %cst = arith.constant dense<0.000000e+00> : vector<4xf32>
    %2 = vector.multi_reduction <add>, %1, %cst [1] : vector<4x16xf32> to vector<4xf32>
    %3 = vector.shape_cast %2 : vector<4xf32> to vector<4x1xf32>
    %cst_2 = arith.constant 1.600000e+01 : f32
    %4 = vector.broadcast %cst_2 : f32 to vector<4x1xf32>
    %5 = arith.divf %3, %4 : vector<4x1xf32>
    %6 = vector.broadcast %5 : vector<4x1xf32> to vector<4x16xf32>
    %7 = arith.subf %1, %6 : vector<4x16xf32>
    %8 = arith.mulf %7, %7 : vector<4x16xf32>
    %cst_3 = arith.constant dense<0.000000e+00> : vector<4xf32>
    %9 = vector.multi_reduction <add>, %8, %cst_3 [1] : vector<4x16xf32> to vector<4xf32>
    %10 = vector.shape_cast %9 : vector<4xf32> to vector<4x1xf32>
    %cst_4 = arith.constant 1.500000e+01 : f32
    %11 = vector.broadcast %cst_4 : f32 to vector<4x1xf32>
    %12 = arith.divf %10, %11 : vector<4x1xf32>
    %13 = math.sqrt %12 : vector<4x1xf32>
    %cst_5 = arith.constant 9.99999974E-6 : f32
    %14 = vector.broadcast %cst_5 : f32 to vector<4x1xf32>
    %15 = arith.addf %13, %14 : vector<4x1xf32>
    %16 = tpu.reciprocal %15 : vector<4x1xf32> -> vector<4x1xf32>
    %c0_6 = arith.constant 0 : index
    %c0_7 = arith.constant 0 : index
    %17 = vector.load %arg3[%c0_6, %c0_7] : memref<4x1xf32, #tpu.memory_space<vmem>>, vector<4x1xf32>
    %18 = arith.mulf %17, %16 : vector<4x1xf32>
    %19 = vector.broadcast %18 : vector<4x1xf32> to vector<4x16xf32>
    %20 = arith.mulf %7, %19 : vector<4x16xf32>
    %c0_8 = arith.constant 0 : index
    %c0_9 = arith.constant 0 : index
    %21 = vector.load %arg4[%c0_8, %c0_9] : memref<4x1xf32, #tpu.memory_space<vmem>>, vector<4x1xf32>
    %22 = vector.broadcast %21 : vector<4x1xf32> to vector<4x16xf32>
    %23 = arith.addf %20, %22 : vector<4x16xf32>
    %c0_10 = arith.constant 0 : index
    %c0_11 = arith.constant 0 : index
    %c0_12 = arith.constant 0 : index
    %24 = vector.load %arg5[%c0_10, %c0_11, %c0_12] : memref<1x4x16xf32, #tpu.memory_space<vmem>>, vector<1x4x16xf32>
    %25 = vector.shape_cast %24 : vector<1x4x16xf32> to vector<4x16xf32>
    %26 = vector.shape_cast %23 : vector<4x16xf32> to vector<1x4x16xf32>
    tpu.vector_store %arg5[%c0_10, %c0_11, %c0_12], %26 {strides = array<i32>} : memref<1x4x16xf32, #tpu.memory_space<vmem>>, vector<1x4x16xf32>,
    %c0_13 = arith.constant 0 : index
    %c0_14 = arith.constant 0 : index
    %c0_15 = arith.constant 0 : index
    %27 = vector.load %arg6[%c0_13, %c0_14, %c0_15] : memref<1x4x1xf32, #tpu.memory_space<vmem>>, vector<1x4x1xf32>
    %28 = vector.shape_cast %27 : vector<1x4x1xf32> to vector<4x1xf32>
    %29 = vector.shape_cast %5 : vector<4x1xf32> to vector<1x4x1xf32>
    tpu.vector_store %arg6[%c0_13, %c0_14, %c0_15], %29 {strides = array<i32>} : memref<1x4x1xf32, #tpu.memory_space<vmem>>, vector<1x4x1xf32>,
    %c0_16 = arith.constant 0 : index
    %c0_17 = arith.constant 0 : index
    %c0_18 = arith.constant 0 : index
    %30 = vector.load %arg7[%c0_16, %c0_17, %c0_18] : memref<1x4x1xf32, #tpu.memory_space<vmem>>, vector<1x4x1xf32>
    %31 = vector.shape_cast %30 : vector<1x4x1xf32> to vector<4x1xf32>
    %32 = vector.shape_cast %15 : vector<4x1xf32> to vector<1x4x1xf32>
    tpu.vector_store %arg7[%c0_16, %c0_17, %c0_18], %32 {strides = array<i32>} : memref<1x4x1xf32, #tpu.memory_space<vmem>>, vector<1x4x1xf32>,
    return
  }
  func.func @transform_0(%arg0: i32, %arg1: i32) -> (i32, i32, i32) {
    %c0_i32 = arith.constant 0 : i32
    %c0_i32_0 = arith.constant 0 : i32
    return %arg0, %arg1, %c0_i32 : i32, i32, i32
  }
  func.func @transform_1(%arg0: i32, %arg1: i32) -> (i32, i32) {
    %c0_i32 = arith.constant 0 : i32
    %c0_i32_0 = arith.constant 0 : i32
    return %arg1, %c0_i32 : i32, i32
  }
  func.func @transform_2(%arg0: i32, %arg1: i32) -> (i32, i32) {
    %c0_i32 = arith.constant 0 : i32
    %c0_i32_0 = arith.constant 0 : i32
    return %arg1, %c0_i32 : i32, i32
  }
  func.func @transform_3(%arg0: i32, %arg1: i32) -> (i32, i32, i32) {
    %c0_i32 = arith.constant 0 : i32
    %c0_i32_0 = arith.constant 0 : i32
    return %arg0, %arg1, %c0_i32 : i32, i32, i32
  }
  func.func @transform_4(%arg0: i32, %arg1: i32) -> (i32, i32, i32) {
    %c0_i32 = arith.constant 0 : i32
    %c0_i32_0 = arith.constant 0 : i32
    return %arg0, %arg1, %c0_i32 : i32, i32, i32
  }
  func.func @transform_5(%arg0: i32, %arg1: i32) -> (i32, i32, i32) {
    %c0_i32 = arith.constant 0 : i32
    %c0_i32_0 = arith.constant 0 : i32
    return %arg0, %arg1, %c0_i32 : i32, i32, i32
  }
}

</mosaic_0001>

<llo_original>
// kernel: tpu_custom_call.1
$region0: #{tpu_custom_call.1}
  #allocation0 [shape = 'u32[]', space=smem, size = 0x4, offset = 0x4, fixed_abs, tag = 'smem constant byte address 0x4 - core index']
  #allocation1 [shape = 'u32[144,128]{1,0:T(1,128)}', space=vmem, size = 0x12000, scoped, tag = 'internal scratch']
  %s0 = inlined_call_operand.vmem [shape: f32[2,4,16], index: 0, kind: input, shape index: {}]
  %s1 = inlined_call_operand.vmem [shape: f32[4,1], index: 1, kind: input, shape index: {}]
  %s2 = inlined_call_operand.vmem [shape: f32[4,1], index: 2, kind: input, shape index: {}]
  %s3 = inlined_call_operand.hbm [shape: f32[2,4,16], index: 3, kind: output, shape index: {0}]
  %s4 = inlined_call_operand.vmem [shape: f32[2,4,1], index: 4, kind: output, shape index: {1}]
  %s5 = inlined_call_operand.vmem [shape: f32[2,4,1], index: 5, kind: output, shape index: {2}]
  %6 = xla_tuple %s3, %s4, %s5
  %s7 = sld [smem:[#allocation0]]
  $region61: #{tpu_custom_call.1} parent=0
    _
  %s9 = ssub.s32 1, %s7
  %s10 = scalar_select 0, %s9, %s7
  $region1: #{tpu_custom_call.1} parent=0
    #allocation2 [shape = 'u8[4096]{0}', space=vmem, size = 0x1000, scoped, tag = 'output window, operand 0']
    #allocation3 [shape = 's32[2]{0}', space=sflag, size = 0x8, scoped, tag = 'scoped memory for tpu_custom_call.1']
    %11 = vsyncpa [#allocation3], 0
    %s12 = scalar_lea.sflag [#allocation3], 1
    %13 = vsyncpa %s12, 0
    loop: start=0, step=1, limit=4
    $region2: #{tpu_custom_call.1} parent=1 // loop_pre_header
      _
    $region3: #{tpu_custom_call.1} parent=1 // loop_header
      %s15 = sphi 0, %s19
      %p16 = scmp.ge.s32.totalorder %s15, 4
      %s22 = sphi 0, %s34
      %s23 = sphi 0, %s30
      %s24 = sphi 0, %s22
      %s25 = sphi 0, %s23
      %s26 = sphi 0, %s24
      %s27 = sphi 0, %s25
      %s39 = sphi 0, %s41
      %s42 = sphi 0, %s39
      %s43 = sphi 0, %s42
      %s59 = sphi 0, %s43
      %s65 = sphi 0, %s67
      %s68 = sphi 0, %s65
      %s69 = sphi 0, %s68
      %s85 = sphi 0, %s69
      %s91 = sphi 0, %s93
      %s94 = sphi 0, %s91
      %s95 = sphi 0, %s94
      %s111 = sphi 0, %s95
      %s119 = sphi 0, %s121
      %s122 = sphi 0, %s119
      %s123 = sphi 0, %s122
      %s139 = sphi 0, %s123
      %s147 = sphi 0, %s149
      %s150 = sphi 0, %s147
      %s151 = sphi 0, %s150
      %s167 = sphi 0, %s151
      %s175 = sphi 0, %s177
      %s178 = sphi 0, %s175
      %s179 = sphi 0, %s178
      %s195 = sphi 0, %s179
    $region4: #{tpu_custom_call.1} parent=1 // loop_header_branch
      %18 = sbr.rel (%p16) target = $region8
    $region5: #{tpu_custom_call.1} parent=1 // loop_body
      %s20 = ssub.s32 %s15, 1
      %s21 = ssub.s32 %s15, 2
      %s28 = sadd.s32 1, %s23
      %p29 = scmp.ge.s32.totalorder %s28, 1
      %s30 = scalar_select %p29, 0, %s28
      %s31 = sadd.s32 1, %s22
      %s32 = scalar_select %p29, %s31, %s22
      %p33 = scmp.ge.s32.totalorder %s32, 2
      %s34 = scalar_select %p33, 0, %s32
      %s35 = ssub.s32 %s22, %s34
      %s36 = ssub.s32 %s23, %s30
      %s37 = sor.u32 %s35, %s36
      %p38 = scmp.eq.s32.totalorder %s37, 0
      %s40 = sadd.s32 %s39, 1
      %s41 = scalar_select %p38, %s39, %s40
      %p44 = pneg %p38
      %p45 = scmp.eq.s32.totalorder %s15, 1
      %p46 = por %p44, %p45
      %p47 = scmp.ne.s32.totalorder %s39, %s42
      %p48 = scmp.eq.s32.totalorder %s15, 0
      %p49 = por %p47, %p48
      %p50 = scmp.ne.s32.totalorder %s39, %s42
      %p51 = scmp.eq.s32.totalorder %s20, 1
      %p52 = por %p50, %p51
      %p53 = scmp.ne.s32.totalorder %s42, %s43
      %p54 = scmp.eq.s32.totalorder %s20, 0
      %p55 = por %p53, %p54
      %p56 = scmp.ne.s32.totalorder %s42, %s43
      %p57 = scmp.eq.s32.totalorder %s21, 1
      %p58 = por %p56, %p57
      %p60 = scmp.ne.s32.totalorder %s43, %s59
      %p61 = scmp.eq.s32.totalorder %s21, 0
      %p62 = por %p60, %p61
      %s63 = ssub.s32 %s23, %s30
      %p64 = scmp.eq.s32.totalorder %s63, 0
      %s66 = sadd.s32 %s65, 1
      %s67 = scalar_select %p64, %s65, %s66
      %p70 = pneg %p64
      %p71 = scmp.eq.s32.totalorder %s15, 1
      %p72 = por %p70, %p71
      %p73 = scmp.ne.s32.totalorder %s65, %s68
      %p74 = scmp.eq.s32.totalorder %s15, 0
      %p75 = por %p73, %p74
      %p76 = scmp.ne.s32.totalorder %s65, %s68
      %p77 = scmp.eq.s32.totalorder %s20, 1
      %p78 = por %p76, %p77
      %p79 = scmp.ne.s32.totalorder %s68, %s69
      %p80 = scmp.eq.s32.totalorder %s20, 0
      %p81 = por %p79, %p80
      %p82 = scmp.ne.s32.totalorder %s68, %s69
      %p83 = scmp.eq.s32.totalorder %s21, 1
      %p84 = por %p82, %p83
      %p86 = scmp.ne.s32.totalorder %s69, %s85
      %p87 = scmp.eq.s32.totalorder %s21, 0
      %p88 = por %p86, %p87
      %s89 = ssub.s32 %s23, %s30
      %p90 = scmp.eq.s32.totalorder %s89, 0
      %s92 = sadd.s32 %s91, 1
      %s93 = scalar_select %p90, %s91, %s92
      %p96 = pneg %p90
      %p97 = scmp.eq.s32.totalorder %s15, 1
      %p98 = por %p96, %p97
      %p99 = scmp.ne.s32.totalorder %s91, %s94
      %p100 = scmp.eq.s32.totalorder %s15, 0
      %p101 = por %p99, %p100
      %p102 = scmp.ne.s32.totalorder %s91, %s94
      %p103 = scmp.eq.s32.totalorder %s20, 1
      %p104 = por %p102, %p103
      %p105 = scmp.ne.s32.totalorder %s94, %s95
      %p106 = scmp.eq.s32.totalorder %s20, 0
      %p107 = por %p105, %p106
      %p108 = scmp.ne.s32.totalorder %s94, %s95
      %p109 = scmp.eq.s32.totalorder %s21, 1
      %p110 = por %p108, %p109
      %p112 = scmp.ne.s32.totalorder %s95, %s111
      %p113 = scmp.eq.s32.totalorder %s21, 0
      %p114 = por %p112, %p113
      %s115 = ssub.s32 %s22, %s34
      %s116 = ssub.s32 %s23, %s30
      %s117 = sor.u32 %s115, %s116
      %p118 = scmp.eq.s32.totalorder %s117, 0
      %s120 = sadd.s32 %s119, 1
      %s121 = scalar_select %p118, %s119, %s120
      %p124 = pneg %p118
      %p125 = scmp.eq.s32.totalorder %s15, 1
      %p126 = por %p124, %p125
      %p127 = scmp.ne.s32.totalorder %s119, %s122
      %p128 = scmp.eq.s32.totalorder %s15, 0
      %p129 = por %p127, %p128
      %p130 = scmp.ne.s32.totalorder %s119, %s122
      %p131 = scmp.eq.s32.totalorder %s20, 1
      %p132 = por %p130, %p131
      %p133 = scmp.ne.s32.totalorder %s122, %s123
      %p134 = scmp.eq.s32.totalorder %s20, 0
      %p135 = por %p133, %p134
      %p136 = scmp.ne.s32.totalorder %s122, %s123
      %p137 = scmp.eq.s32.totalorder %s21, 1
      %p138 = por %p136, %p137
      %p140 = scmp.ne.s32.totalorder %s123, %s139
      %p141 = scmp.eq.s32.totalorder %s21, 0
      %p142 = por %p140, %p141
      %s143 = ssub.s32 %s22, %s34
      %s144 = ssub.s32 %s23, %s30
      %s145 = sor.u32 %s143, %s144
      %p146 = scmp.eq.s32.totalorder %s145, 0
      %s148 = sadd.s32 %s147, 1
      %s149 = scalar_select %p146, %s147, %s148
      %p152 = pneg %p146
      %p153 = scmp.eq.s32.totalorder %s15, 1
      %p154 = por %p152, %p153
      %p155 = scmp.ne.s32.totalorder %s147, %s150
      %p156 = scmp.eq.s32.totalorder %s15, 0
      %p157 = por %p155, %p156
      %p158 = scmp.ne.s32.totalorder %s147, %s150
      %p159 = scmp.eq.s32.totalorder %s20, 1
      %p160 = por %p158, %p159
      %p161 = scmp.ne.s32.totalorder %s150, %s151
      %p162 = scmp.eq.s32.totalorder %s20, 0
      %p163 = por %p161, %p162
      %p164 = scmp.ne.s32.totalorder %s150, %s151
      %p165 = scmp.eq.s32.totalorder %s21, 1
      %p166 = por %p164, %p165
      %p168 = scmp.ne.s32.totalorder %s151, %s167
      %p169 = scmp.eq.s32.totalorder %s21, 0
      %p170 = por %p168, %p169
      %s171 = ssub.s32 %s22, %s34
      %s172 = ssub.s32 %s23, %s30
      %s173 = sor.u32 %s171, %s172
      %p174 = scmp.eq.s32.totalorder %s173, 0
      %s176 = sadd.s32 %s175, 1
      %s177 = scalar_select %p174, %s175, %s176
      %p180 = pneg %p174
      %p181 = scmp.eq.s32.totalorder %s15, 1
      %p182 = por %p180, %p181
      %p183 = scmp.ne.s32.totalorder %s175, %s178
      %p184 = scmp.eq.s32.totalorder %s15, 0
      %p185 = por %p183, %p184
      %p186 = scmp.ne.s32.totalorder %s175, %s178
      %p187 = scmp.eq.s32.totalorder %s20, 1
      %p188 = por %p186, %p187
      %p189 = scmp.ne.s32.totalorder %s178, %s179
      %p190 = scmp.eq.s32.totalorder %s20, 0
      %p191 = por %p189, %p190
      %p192 = scmp.ne.s32.totalorder %s178, %s179
      %p193 = scmp.eq.s32.totalorder %s21, 1
      %p194 = por %p192, %p193
      %p196 = scmp.ne.s32.totalorder %s179, %s195
      %p197 = scmp.eq.s32.totalorder %s21, 0
      %p198 = por %p196, %p197
      %p199 = scmp.le.s32.totalorder 1, %s15
      %p200 = scmp.lt.s32.totalorder %s15, 3
      %p201 = pnand %p199, %p200
      %p202 = pneg %p201
      // Predicated region
      $region9: #{tpu_custom_call.1} parent=5 // pred_check
        _
      $region10: #{tpu_custom_call.1} parent=5 // pred_check_branch
        %204 = sbr.rel (%p201) target = $region12
      $region11: #{tpu_custom_call.1} parent=5 // pred_region
        %s205 = ssub.s32 %s15, 1
        // Predicated region
        $region13: #{tpu_custom_call.1} parent=11 // pred_check
          %p206 = pneg %p81
        $region14: #{tpu_custom_call.1} parent=11 // pred_check_branch
          %208 = sbr.rel (%p206) target = $region16
        $region15: #{tpu_custom_call.1} parent=11 // pred_region
          %p209 = scmp.lt.s32.totalorder %s25, 0
          %s210 = scalar_select %p209, %s25, 0
          %s211 = smul.addr %s210, 4
          %s212 = scalar_lea.vmem %s1, %s211
        $region16: #{tpu_custom_call.1} parent=11 // pred_fallthru
          _
        // Predicated region
        $region17: #{tpu_custom_call.1} parent=11 // pred_check
          %p213 = pneg %p107
        $region18: #{tpu_custom_call.1} parent=11 // pred_check_branch
          %215 = sbr.rel (%p213) target = $region20
        $region19: #{tpu_custom_call.1} parent=11 // pred_region
          %p216 = scmp.lt.s32.totalorder %s25, 0
          %s217 = scalar_select %p216, %s25, 0
          %s218 = smul.addr %s217, 4
          %s219 = scalar_lea.vmem %s2, %s218
        $region20: #{tpu_custom_call.1} parent=11 // pred_fallthru
          _
      $region12: #{tpu_custom_call.1} parent=5 // pred_fallthru
        _
      %p220 = scmp.lt.s32.totalorder %s15, 2
      // Predicated region
      $region21: #{tpu_custom_call.1} parent=5 // pred_check
        %p221 = pneg %p220
      $region22: #{tpu_custom_call.1} parent=5 // pred_check_branch
        %223 = sbr.rel (%p221) target = $region24
      $region23: #{tpu_custom_call.1} parent=5 // pred_region
        // Predicated region
        $region25: #{tpu_custom_call.1} parent=23 // pred_check
          %p224 = pneg %p49
        $region26: #{tpu_custom_call.1} parent=23 // pred_check_branch
          %226 = sbr.rel (%p224) target = $region28
        $region27: #{tpu_custom_call.1} parent=23 // pred_region
          %p227 = scmp.lt.s32.totalorder %s22, 1
          %s228 = scalar_select %p227, %s22, 1
          %p229 = scmp.lt.s32.totalorder %s23, 0
          %s230 = scalar_select %p229, %s23, 0
          %s231 = sadd.s32 %s230, %s228
          %s232 = smul.addr %s231, 4
          %s233 = scalar_lea.vmem %s0, %s232
        $region28: #{tpu_custom_call.1} parent=23 // pred_fallthru
          _
      $region24: #{tpu_custom_call.1} parent=5 // pred_fallthru
        _
      %p234 = scmp.le.s32.totalorder 1, %s15
      %p235 = scmp.lt.s32.totalorder %s15, 3
      %p236 = pnand %p234, %p235
      %p237 = pneg %p236
      // Predicated region
      $region29: #{tpu_custom_call.1} parent=5 // pred_check
        _
      $region30: #{tpu_custom_call.1} parent=5 // pred_check_branch
        %239 = sbr.rel (%p236) target = $region32
      $region31: #{tpu_custom_call.1} parent=5 // pred_region
        %s240 = ssub.s32 %s15, 1
        %p241 = scmp.lt.s32.totalorder %s24, 1
        %s242 = scalar_select %p241, %s24, 1
        %p243 = scmp.lt.s32.totalorder %s25, 0
        %s244 = scalar_select %p243, %s25, 0
        %s245 = sadd.s32 %s244, %s242
        %s246 = smul.addr %s245, 4
        %s247 = scalar_lea.vmem %s0, %s246
        %p248 = pneg %p55
        %p249 = pneg %p52
        %p250 = scmp.lt.s32.totalorder %s25, 0
        %s251 = scalar_select %p250, %s25, 0
        %s252 = smul.addr %s251, 4
        %s253 = scalar_lea.vmem %s1, %s252
        %p254 = pneg %p81
        %p255 = pneg %p78
        %p256 = scmp.lt.s32.totalorder %s25, 0
        %s257 = scalar_select %p256, %s25, 0
        %s258 = smul.addr %s257, 4
        %s259 = scalar_lea.vmem %s2, %s258
        %p260 = pneg %p107
        %p261 = pneg %p104
        %p262 = pneg %p135
        %p263 = pneg %p132
        %s264 = sand.u32 %s122, 1
        %s265 = scalar_lea.sflag [#allocation3], %s264
        %s266 = sand.u32 %s122, 1
        %s267 = smul.addr %s266, 4
        %s268 = scalar_lea.vmem [#allocation2], %s267
        %p269 = pneg %p163
        %p270 = pneg %p160
        %p271 = scmp.lt.s32.totalorder %s24, 1
        %s272 = scalar_select %p271, %s24, 1
        %p273 = scmp.lt.s32.totalorder %s25, 0
        %s274 = scalar_select %p273, %s25, 0
        %s275 = sadd.s32 %s274, %s272
        %s276 = smul.addr %s275, 4
        %s277 = scalar_lea.vmem %s4, %s276
        %p278 = pneg %p191
        %p279 = pneg %p188
        %p280 = scmp.lt.s32.totalorder %s24, 1
        %s281 = scalar_select %p280, %s24, 1
        %p282 = scmp.lt.s32.totalorder %s25, 0
        %s283 = scalar_select %p282, %s25, 0
        %s284 = sadd.s32 %s283, %s281
        %s285 = smul.addr %s284, 4
        %s286 = scalar_lea.vmem %s5, %s285
        %p287 = scmp.lt.s32.totalorder %s24, 1
        %s288 = scalar_select %p287, %s24, 1
        %p289 = scmp.lt.s32.totalorder %s25, 0
        %s290 = scalar_select %p289, %s25, 0
        %s291 = sadd.s32 %s290, %s288
        %s292 = smul.addr %s291, 4
        %s293 = scalar_lea.vmem %s0, %s292
        %p294 = scmp.lt.s32.totalorder %s25, 0
        %s295 = scalar_select %p294, %s25, 0
        %s296 = smul.addr %s295, 4
        %s297 = scalar_lea.vmem %s1, %s296
        %p298 = scmp.lt.s32.totalorder %s25, 0
        %s299 = scalar_select %p298, %s25, 0
        %s300 = smul.addr %s299, 4
        %s301 = scalar_lea.vmem %s2, %s300
        %p302 = scmp.lt.s32.totalorder %s24, 1
        %s303 = scalar_select %p302, %s24, 1
        %p304 = scmp.lt.s32.totalorder %s25, 0
        %s305 = scalar_select %p304, %s25, 0
        %s306 = sadd.s32 %s305, %s303
        %s307 = smul.addr %s306, 4
        %s308 = scalar_lea.vmem %s4, %s307
        %p309 = scmp.lt.s32.totalorder %s24, 1
        %s310 = scalar_select %p309, %s24, 1
        %p311 = scmp.lt.s32.totalorder %s25, 0
        %s312 = scalar_select %p311, %s25, 0
        %s313 = sadd.s32 %s312, %s310
        %s314 = smul.addr %s313, 4
        %s315 = scalar_lea.vmem %s5, %s314
        %v316 = vld [vmem:[%s293] sm:$0xf]
        %vm317 = vcmask 125952
        %v318 = vsel %vm317, %v316, 0.0
        %319 = vadd.xlane.f32.xlu0 %v318
        %v320 = vpop.xlane.xlu0 %319
        %v321 = vrcp.pop 16.0
        %v322 = vmul.f32 %v320, %v321
        %v323 = vsub.f32 %v316, %v322
        %v324 = vmul.f32 %v323, %v323
        %v325 = vsel %vm317, %v324, 0.0
        %326 = vadd.xlane.f32.xlu0 %v325
        %v327 = vpop.xlane.xlu0 %326
        %v328 = vrcp.pop 15.0
        %v329 = vmul.f32 %v327, %v328
        %v330 = vrsqrt.pop %v329
        %v331 = vmul.f32 %v329, %v330
        %vm332 = vcmp.eq.f32.partialorder %v329, inf
        %v333 = vsel %vm332, %v329, %v331
        %vm334 = vcmp.eq.f32.partialorder %v329, 0.0
        %v335 = vand.u32 %v329, 2147483648
        %v336 = vsel %vm334, %v335, %v333
        %v337 = vadd.f32 %v336, 1e-05
        %v338 = vrcp.pop %v337
        %v339 = vld [vmem:[%s297] sm:$0xf]
        %v340 = vmul.f32 %v339, %v338
        %342 = vset.pattern.permute.xlu0 0
        %343 = vperm.xlu0 %342, %v340
        %v344 = vpop.permute.xlu0 %343
        %v346 = vmul.f32 %v323, %v344
        %v347 = vld [vmem:[%s301] sm:$0xf]
        %349 = vset.pattern.permute.xlu0 0
        %350 = vperm.xlu0 %349, %v347
        %v351 = vpop.permute.xlu0 %350
        %v353 = vadd.f32 %v346, %v351
        %354 = vst.msk [vmem:[%s268] sm:$0xf] %vm317, %v353
        %vm355 = vcmask 3072
        %356 = vst.msk [vmem:[%s308] sm:$0xf] %vm355, %v322
        %357 = vst.msk [vmem:[%s315] sm:$0xf] %vm355, %v337
        %s358 = sand.u32 %s122, 1
        %s359 = scalar_lea.sflag [#allocation3], %s358
        %s360 = sand.u32 %s122, 1
        %s361 = smul.addr %s360, 4
        %s362 = scalar_lea.vmem [#allocation2], %s361
        %p363 = scmp.lt.s32.totalorder %s24, 1
        %s364 = scalar_select %p363, %s24, 1
        %p365 = scmp.lt.s32.totalorder %s25, 0
        %s366 = scalar_select %p365, %s25, 0
        %s367 = sadd.s32 %s366, %s364
        %s368 = smul.addr %s367, 4
        %s369 = scalar_lea.vmem %s4, %s368
        %p370 = scmp.lt.s32.totalorder %s24, 1
        %s371 = scalar_select %p370, %s24, 1
        %p372 = scmp.lt.s32.totalorder %s25, 0
        %s373 = scalar_select %p372, %s25, 0
        %s374 = sadd.s32 %s373, %s371
        %s375 = smul.addr %s374, 4
        %s376 = scalar_lea.vmem %s5, %s375
        // Predicated region
        $region33: #{tpu_custom_call.1} parent=31 // pred_check
          %p377 = pneg %p132
        $region34: #{tpu_custom_call.1} parent=31 // pred_check_branch
          %379 = sbr.rel (%p377) target = $region36
        $region35: #{tpu_custom_call.1} parent=31 // pred_region
          %s381 = ssub.s32 64, 64
          %382 = vsyncadd %s359, %s381
          %s383 = sadd.s32 %s25, %s24
          %s384 = smul.addr %s383, 64
          %s385 = scalar_lea.hbm %s3, %s384
          %s387 = sshll.u32 %s362, 4
          %s388 = int_to_ptr.vmem [resolvable:$true] %s387
          %390 = dma.vmem_to_hbm [thread:$0]  %s388, 64, %s385, %s359
        $region36: #{tpu_custom_call.1} parent=31 // pred_fallthru
          _
        // Predicated region
        $region37: #{tpu_custom_call.1} parent=31 // pred_check
          %p391 = pneg %p160
        $region38: #{tpu_custom_call.1} parent=31 // pred_check_branch
          %393 = sbr.rel (%p391) target = $region40
        $region39: #{tpu_custom_call.1} parent=31 // pred_region
          _
        $region40: #{tpu_custom_call.1} parent=31 // pred_fallthru
          _
        // Predicated region
        $region41: #{tpu_custom_call.1} parent=31 // pred_check
          %p394 = pneg %p188
        $region42: #{tpu_custom_call.1} parent=31 // pred_check_branch
          %396 = sbr.rel (%p394) target = $region44
        $region43: #{tpu_custom_call.1} parent=31 // pred_region
          _
        $region44: #{tpu_custom_call.1} parent=31 // pred_fallthru
          _
      $region32: #{tpu_custom_call.1} parent=5 // pred_fallthru
        _
      %p397 = scmp.le.s32.totalorder 2, %s15
      // Predicated region
      $region45: #{tpu_custom_call.1} parent=5 // pred_check
        %p398 = pneg %p397
      $region46: #{tpu_custom_call.1} parent=5 // pred_check_branch
        %400 = sbr.rel (%p398) target = $region48
      $region47: #{tpu_custom_call.1} parent=5 // pred_region
        %s401 = ssub.s32 %s15, 2
        // Predicated region
        $region49: #{tpu_custom_call.1} parent=47 // pred_check
          %p402 = pneg %p138
        $region50: #{tpu_custom_call.1} parent=47 // pred_check_branch
          %404 = sbr.rel (%p402) target = $region52
        $region51: #{tpu_custom_call.1} parent=47 // pred_region
          %s405 = sand.u32 %s123, 1
          %s406 = scalar_lea.sflag [#allocation3], %s405
          %s407 = sand.u32 %s123, 1
          %s408 = smul.addr %s407, 4
          %s409 = scalar_lea.vmem [#allocation2], %s408
          %410 = dma.done %s406, 64
        $region52: #{tpu_custom_call.1} parent=47 // pred_fallthru
          _
        // Predicated region
        $region53: #{tpu_custom_call.1} parent=47 // pred_check
          %p411 = pneg %p166
        $region54: #{tpu_custom_call.1} parent=47 // pred_check_branch
          %413 = sbr.rel (%p411) target = $region56
        $region55: #{tpu_custom_call.1} parent=47 // pred_region
          %p414 = scmp.lt.s32.totalorder %s26, 1
          %s415 = scalar_select %p414, %s26, 1
          %p416 = scmp.lt.s32.totalorder %s27, 0
          %s417 = scalar_select %p416, %s27, 0
          %s418 = sadd.s32 %s417, %s415
          %s419 = smul.addr %s418, 4
          %s420 = scalar_lea.vmem %s4, %s419
        $region56: #{tpu_custom_call.1} parent=47 // pred_fallthru
          _
        // Predicated region
        $region57: #{tpu_custom_call.1} parent=47 // pred_check
          %p421 = pneg %p194
        $region58: #{tpu_custom_call.1} parent=47 // pred_check_branch
          %423 = sbr.rel (%p421) target = $region60
        $region59: #{tpu_custom_call.1} parent=47 // pred_region
          %p424 = scmp.lt.s32.totalorder %s26, 1
          %s425 = scalar_select %p424, %s26, 1
          %p426 = scmp.lt.s32.totalorder %s27, 0
          %s427 = scalar_select %p426, %s27, 0
          %s428 = sadd.s32 %s427, %s425
          %s429 = smul.addr %s428, 4
          %s430 = scalar_lea.vmem %s5, %s429
        $region60: #{tpu_custom_call.1} parent=47 // pred_fallthru
          _
      $region48: #{tpu_custom_call.1} parent=5 // pred_fallthru
        _
    $region6: #{tpu_custom_call.1} parent=1 // loop_footer
      %s19 = sadd.s32 1, %s15
    $region7: #{tpu_custom_call.1} parent=1 // loop_footer_branch
      %14 = sbr.rel target = $region3
    $region8: #{tpu_custom_call.1} parent=1 // loop_exit
      _
    %431 = vsyncpa [#allocation3], 1
    %s432 = scalar_lea.sflag [#allocation3], 1
    %433 = vsyncpa %s432, 1

</llo_original>
